<compile_context>
chip_gen: v7x
topology: tpu7x:2x2x1
jax: 0.10.0
libtpu: 0.0.40
codegen_flags: <defaults>
</compile_context>

<pallas_src>
import jax
import jax.numpy as jnp
import numpy as np
from jax.experimental import pallas as pl
from jax.experimental.pallas import tpu as pltpu


def _ordinal_loss_kernel(logits_ref, targets_ref, out_ref):
    # logits_ref : (C, tile_s, L)  native dtype
    # targets_ref: (tile_s, L)     int32
    # out_ref    : (tile_s, L)     float32
    c = logits_ref.shape[0]
    t = targets_ref[...]

    # ---- pass 1: per-sample max over the C class slabs (short unrolled VPU sweep) ----
    m = logits_ref[0].astype(jnp.float32)                 # (tile_s, L)
    for i in range(1, c):
        m = jnp.maximum(m, logits_ref[i].astype(jnp.float32))

    # ---- pass 2 (fused): exp-sum, target-logit select, first-argmax ----
    sum_exp = jnp.zeros_like(m)
    tgt_logit = jnp.zeros_like(m)
    pred = jnp.full(t.shape, c, dtype=jnp.int32)          # sentinel = C
    for i in range(c):
        row = logits_ref[i].astype(jnp.float32)           # load per-class (keeps live set small)
        sum_exp = sum_exp + jnp.exp(row - m)              # EUP exp + VPU add
        tgt_logit = jnp.where(t == i, row, tgt_logit)
        pred = jnp.minimum(pred, jnp.where(row == m, i, c))   # first maximal index

    # -log_softmax(x)[target] = (m + log(sum_exp)) - x[target]
    base_loss = (m + jnp.log(sum_exp)) - tgt_logit
    distance = jnp.abs(pred - t).astype(jnp.float32)
    out_ref[...] = (1.0 + distance) * base_loss           # dense full-width store


def ordinal_loss(logits, targets, *, lane=512, max_tile_s=256):
    """logits: (N, C) float (any dtype); targets: (N,) int. Returns (N,) f32 per-sample loss."""
    n, c = logits.shape

    # --- tile sizing: batch packed as (S sublane-rows, lane lanes) ---
    s_needed = max(1, -(-n // lane))                       # ceil(n / lane)
    tile_s = min(max_tile_s, s_needed)
    if s_needed >= 16:
        # keep >= 2 grid steps (multiple of 8 sublanes) so "parallel" can shard across TCs (v7x)
        half = -(-((s_needed + 1) // 2) // 8) * 8
        tile_s = min(tile_s, half)
    s_pad = -(-s_needed // tile_s) * tile_s
    n_pad = s_pad * lane

    targets_p = targets.astype(jnp.int32)
    logits_p = logits
    if n_pad != n:
        logits_p = jnp.pad(logits_p, ((0, n_pad - n), (0, 0)))
        targets_p = jnp.pad(targets_p, (0, n_pad - n))

    # classes -> leading axis, batch -> (sublane, lane) slab (single fused copy in XLA).
    logits_csl = jnp.transpose(logits_p, (1, 0)).reshape(c, s_pad, lane)   # (C, S, L)
    targets_sl = targets_p.reshape(s_pad, lane)                            # (S, L)

    grid = (s_pad // tile_s,)

    out = pl.pallas_call(
        _ordinal_loss_kernel,
        out_shape=jax.ShapeDtypeStruct((s_pad, lane), jnp.float32),
        grid=grid,
        in_specs=[
            pl.BlockSpec((c, tile_s, lane), lambda i: (0, i, 0)),   # logits slab
            pl.BlockSpec((tile_s, lane), lambda i: (i, 0)),         # targets slab
        ],
        out_specs=pl.BlockSpec((tile_s, lane), lambda i: (i, 0)),
        compiler_params=pltpu.CompilerParams(
            dimension_semantics=("parallel",),                      # shard tiles across TCs on v7x
        ),
    )(logits_csl, targets_sl)

    return out.reshape(n_pad)[:n]


def _reference_ordinal_loss(logits, targets):
    """Plain-JAX reference mirroring the PyTorch module."""
    logp = jax.nn.log_softmax(logits.astype(jnp.float32), axis=-1)
    base = -jnp.take_along_axis(logp, targets[:, None].astype(jnp.int32), axis=-1)[:, 0]
    pred = jnp.argmax(logits, axis=-1).astype(jnp.int32)
    dist = jnp.abs(pred - targets.astype(jnp.int32)).astype(jnp.float32)
    return (1.0 + dist) * base


if __name__ == "__main__":
    num_classes = 5   # from OrdinalLoss(num_classes)
    batch = 8

    key = jax.random.PRNGKey(0)
    k_logits, k_targets = jax.random.split(key)
    logits = jax.random.normal(k_logits, (batch, num_classes), dtype=jnp.float32)
    targets = jax.random.randint(k_targets, (batch,), 0, num_classes, dtype=jnp.int32)

    loss = ordinal_loss(logits, targets)
    jax.block_until_ready(loss)
    ref = _reference_ordinal_loss(logits, targets)
    np.testing.assert_allclose(np.asarray(loss), np.asarray(ref), rtol=1e-5, atol=1e-5)

    # larger bf16 case (single tile, non-multiple-of-lane batch)
    k2a, k2b = jax.random.split(jax.random.PRNGKey(1))
    big_logits = jax.random.normal(k2a, (3000, num_classes), dtype=jnp.bfloat16)
    big_targets = jax.random.randint(k2b, (3000,), 0, num_classes, dtype=jnp.int32)
    big_loss = ordinal_loss(big_logits, big_targets)
    jax.block_until_ready(big_loss)
    big_ref = _reference_ordinal_loss(big_logits, big_targets)
    np.testing.assert_allclose(np.asarray(big_loss), np.asarray(big_ref), rtol=2e-2, atol=2e-2)

    # multi-tile case to exercise the grid / pipelining path (grid >= 2)
    k3a, k3b = jax.random.split(jax.random.PRNGKey(2))
    med_logits = jax.random.normal(k3a, (9000, num_classes), dtype=jnp.float32)
    med_targets = jax.random.randint(k3b, (9000,), 0, num_classes, dtype=jnp.int32)
    med_loss = ordinal_loss(med_logits, med_targets)
    jax.block_until_ready(med_loss)
    med_ref = _reference_ordinal_loss(med_logits, med_targets)
    np.testing.assert_allclose(np.asarray(med_loss), np.asarray(med_ref), rtol=1e-5, atol=1e-5)

    print("KERNEL_OK")
</pallas_src>

<mosaic_0001>
module attributes {stable_mosaic.version = 11 : i64} {
  func.func @_ordinal_loss_kernel(%arg0: i32, %arg1: memref<5x1x512xf32, #tpu.memory_space<vmem>>, %arg2: memref<1x512xi32, #tpu.memory_space<vmem>>, %arg3: memref<1x512xf32, #tpu.memory_space<vmem>>) attributes {dimension_semantics = [#tpu.dimension_semantics<parallel>], iteration_bounds = array<i64: 1>, scalar_prefetch = 0 : i64, scratch_operands = 0 : i64, tpu.core_type = #tpu.core_type<tc>, window_params = [{transform_indices = @transform_0, window_bounds = array<i64: 5, 1, 512>}, {transform_indices = @transform_1, window_bounds = array<i64: 1, 512>}, {transform_indices = @transform_2, window_bounds = array<i64: 1, 512>}]} {
    %c0 = arith.constant 0 : index
    %c0_0 = arith.constant 0 : index
    %0 = vector.load %arg2[%c0, %c0_0] : memref<1x512xi32, #tpu.memory_space<vmem>>, vector<1x512xi32>
    %c0_1 = arith.constant 0 : index
    %c0_2 = arith.constant 0 : index
    %c0_3 = arith.constant 0 : index
    %1 = vector.load %arg1[%c0_1, %c0_2, %c0_3] : memref<5x1x512xf32, #tpu.memory_space<vmem>>, vector<1x1x512xf32>
    %2 = vector.shape_cast %1 : vector<1x1x512xf32> to vector<1x512xf32>
    %c1 = arith.constant 1 : index
    %c0_4 = arith.constant 0 : index
    %c0_5 = arith.constant 0 : index
    %3 = vector.load %arg1[%c1, %c0_4, %c0_5] : memref<5x1x512xf32, #tpu.memory_space<vmem>>, vector<1x1x512xf32>
    %4 = vector.shape_cast %3 : vector<1x1x512xf32> to vector<1x512xf32>
    %5 = arith.maximumf %2, %4 : vector<1x512xf32>
    %c2 = arith.constant 2 : index
    %c0_6 = arith.constant 0 : index
    %c0_7 = arith.constant 0 : index
    %6 = vector.load %arg1[%c2, %c0_6, %c0_7] : memref<5x1x512xf32, #tpu.memory_space<vmem>>, vector<1x1x512xf32>
    %7 = vector.shape_cast %6 : vector<1x1x512xf32> to vector<1x512xf32>
    %8 = arith.maximumf %5, %7 : vector<1x512xf32>
    %c3 = arith.constant 3 : index
    %c0_8 = arith.constant 0 : index
    %c0_9 = arith.constant 0 : index
    %9 = vector.load %arg1[%c3, %c0_8, %c0_9] : memref<5x1x512xf32, #tpu.memory_space<vmem>>, vector<1x1x512xf32>
    %10 = vector.shape_cast %9 : vector<1x1x512xf32> to vector<1x512xf32>
    %11 = arith.maximumf %8, %10 : vector<1x512xf32>
    %c4 = arith.constant 4 : index
    %c0_10 = arith.constant 0 : index
    %c0_11 = arith.constant 0 : index
    %12 = vector.load %arg1[%c4, %c0_10, %c0_11] : memref<5x1x512xf32, #tpu.memory_space<vmem>>, vector<1x1x512xf32>
    %13 = vector.shape_cast %12 : vector<1x1x512xf32> to vector<1x512xf32>
    %14 = arith.maximumf %11, %13 : vector<1x512xf32>
    %cst = arith.constant 0.000000e+00 : f32
    %15 = vector.broadcast %cst : f32 to vector<1x512xf32>
    %cst_12 = arith.constant 0.000000e+00 : f32
    %16 = vector.broadcast %cst_12 : f32 to vector<1x512xf32>
    %c5_i32 = arith.constant 5 : i32
    %17 = vector.broadcast %c5_i32 : i32 to vector<1x512xi32>
    %c0_13 = arith.constant 0 : index
    %c0_14 = arith.constant 0 : index
    %c0_15 = arith.constant 0 : index
    %18 = vector.load %arg1[%c0_13, %c0_14, %c0_15] : memref<5x1x512xf32, #tpu.memory_space<vmem>>, vector<1x1x512xf32>
    %19 = vector.shape_cast %18 : vector<1x1x512xf32> to vector<1x512xf32>
    %20 = arith.subf %19, %14 : vector<1x512xf32>
    %21 = math.exp %20 : vector<1x512xf32>
    %22 = arith.addf %15, %21 : vector<1x512xf32>
    %c0_i32 = arith.constant 0 : i32
    %23 = vector.broadcast %c0_i32 : i32 to vector<1x512xi32>
    %24 = arith.cmpi eq, %0, %23 : vector<1x512xi32>
    %25 = arith.select %24, %19, %16 : vector<1x512xi1>, vector<1x512xf32>
    %26 = arith.cmpf oeq, %19, %14 : vector<1x512xf32>
    %c0_i32_16 = arith.constant 0 : i32
    %c5_i32_17 = arith.constant 5 : i32
    %27 = vector.broadcast %c0_i32_16 : i32 to vector<1x512xi32>
    %28 = vector.broadcast %c5_i32_17 : i32 to vector<1x512xi32>
    %29 = arith.select %26, %27, %28 : vector<1x512xi1>, vector<1x512xi32>
    %30 = arith.minsi %17, %29 : vector<1x512xi32>
    %c1_18 = arith.constant 1 : index
    %c0_19 = arith.constant 0 : index
    %c0_20 = arith.constant 0 : index
    %31 = vector.load %arg1[%c1_18, %c0_19, %c0_20] : memref<5x1x512xf32, #tpu.memory_space<vmem>>, vector<1x1x512xf32>
    %32 = vector.shape_cast %31 : vector<1x1x512xf32> to vector<1x512xf32>
    %33 = arith.subf %32, %14 : vector<1x512xf32>
    %34 = math.exp %33 : vector<1x512xf32>
    %35 = arith.addf %22, %34 : vector<1x512xf32>
    %c1_i32 = arith.constant 1 : i32
    %36 = vector.broadcast %c1_i32 : i32 to vector<1x512xi32>
    %37 = arith.cmpi eq, %0, %36 : vector<1x512xi32>
    %38 = arith.select %37, %32, %25 : vector<1x512xi1>, vector<1x512xf32>
    %39 = arith.cmpf oeq, %32, %14 : vector<1x512xf32>
    %c1_i32_21 = arith.constant 1 : i32
    %c5_i32_22 = arith.constant 5 : i32
    %40 = vector.broadcast %c1_i32_21 : i32 to vector<1x512xi32>
    %41 = vector.broadcast %c5_i32_22 : i32 to vector<1x512xi32>
    %42 = arith.select %39, %40, %41 : vector<1x512xi1>, vector<1x512xi32>
    %43 = arith.minsi %30, %42 : vector<1x512xi32>
    %c2_23 = arith.constant 2 : index
    %c0_24 = arith.constant 0 : index
    %c0_25 = arith.constant 0 : index
    %44 = vector.load %arg1[%c2_23, %c0_24, %c0_25] : memref<5x1x512xf32, #tpu.memory_space<vmem>>, vector<1x1x512xf32>
    %45 = vector.shape_cast %44 : vector<1x1x512xf32> to vector<1x512xf32>
    %46 = arith.subf %45, %14 : vector<1x512xf32>
    %47 = math.exp %46 : vector<1x512xf32>
    %48 = arith.addf %35, %47 : vector<1x512xf32>
    %c2_i32 = arith.constant 2 : i32
    %49 = vector.broadcast %c2_i32 : i32 to vector<1x512xi32>
    %50 = arith.cmpi eq, %0, %49 : vector<1x512xi32>
    %51 = arith.select %50, %45, %38 : vector<1x512xi1>, vector<1x512xf32>
    %52 = arith.cmpf oeq, %45, %14 : vector<1x512xf32>
    %c2_i32_26 = arith.constant 2 : i32
    %c5_i32_27 = arith.constant 5 : i32
    %53 = vector.broadcast %c2_i32_26 : i32 to vector<1x512xi32>
    %54 = vector.broadcast %c5_i32_27 : i32 to vector<1x512xi32>
    %55 = arith.select %52, %53, %54 : vector<1x512xi1>, vector<1x512xi32>
    %56 = arith.minsi %43, %55 : vector<1x512xi32>
    %c3_28 = arith.constant 3 : index
    %c0_29 = arith.constant 0 : index
    %c0_30 = arith.constant 0 : index
    %57 = vector.load %arg1[%c3_28, %c0_29, %c0_30] : memref<5x1x512xf32, #tpu.memory_space<vmem>>, vector<1x1x512xf32>
    %58 = vector.shape_cast %57 : vector<1x1x512xf32> to vector<1x512xf32>
    %59 = arith.subf %58, %14 : vector<1x512xf32>
    %60 = math.exp %59 : vector<1x512xf32>
    %61 = arith.addf %48, %60 : vector<1x512xf32>
    %c3_i32 = arith.constant 3 : i32
    %62 = vector.broadcast %c3_i32 : i32 to vector<1x512xi32>
    %63 = arith.cmpi eq, %0, %62 : vector<1x512xi32>
    %64 = arith.select %63, %58, %51 : vector<1x512xi1>, vector<1x512xf32>
    %65 = arith.cmpf oeq, %58, %14 : vector<1x512xf32>
    %c3_i32_31 = arith.constant 3 : i32
    %c5_i32_32 = arith.constant 5 : i32
    %66 = vector.broadcast %c3_i32_31 : i32 to vector<1x512xi32>
    %67 = vector.broadcast %c5_i32_32 : i32 to vector<1x512xi32>
    %68 = arith.select %65, %66, %67 : vector<1x512xi1>, vector<1x512xi32>
    %69 = arith.minsi %56, %68 : vector<1x512xi32>
    %c4_33 = arith.constant 4 : index
    %c0_34 = arith.constant 0 : index
    %c0_35 = arith.constant 0 : index
    %70 = vector.load %arg1[%c4_33, %c0_34, %c0_35] : memref<5x1x512xf32, #tpu.memory_space<vmem>>, vector<1x1x512xf32>
    %71 = vector.shape_cast %70 : vector<1x1x512xf32> to vector<1x512xf32>
    %72 = arith.subf %71, %14 : vector<1x512xf32>
    %73 = math.exp %72 : vector<1x512xf32>
    %74 = arith.addf %61, %73 : vector<1x512xf32>
    %c4_i32 = arith.constant 4 : i32
    %75 = vector.broadcast %c4_i32 : i32 to vector<1x512xi32>
    %76 = arith.cmpi eq, %0, %75 : vector<1x512xi32>
    %77 = arith.select %76, %71, %64 : vector<1x512xi1>, vector<1x512xf32>
    %78 = arith.cmpf oeq, %71, %14 : vector<1x512xf32>
    %c4_i32_36 = arith.constant 4 : i32
    %c5_i32_37 = arith.constant 5 : i32
    %79 = vector.broadcast %c4_i32_36 : i32 to vector<1x512xi32>
    %80 = vector.broadcast %c5_i32_37 : i32 to vector<1x512xi32>
    %81 = arith.select %78, %79, %80 : vector<1x512xi1>, vector<1x512xi32>
    %82 = arith.minsi %69, %81 : vector<1x512xi32>
    %83 = math.log %74 : vector<1x512xf32>
    %84 = arith.addf %14, %83 : vector<1x512xf32>
    %85 = arith.subf %84, %77 : vector<1x512xf32>
    %86 = arith.subi %82, %0 : vector<1x512xi32>
    %87 = math.absi %86 : vector<1x512xi32>
    %88 = arith.sitofp %87 : vector<1x512xi32> to vector<1x512xf32>
    %cst_38 = arith.constant 1.000000e+00 : f32
    %89 = vector.broadcast %cst_38 : f32 to vector<1x512xf32>
    %90 = arith.addf %89, %88 : vector<1x512xf32>
    %91 = arith.mulf %90, %85 : vector<1x512xf32>
    %c0_39 = arith.constant 0 : index
    %c0_40 = arith.constant 0 : index
    %92 = vector.load %arg3[%c0_39, %c0_40] : memref<1x512xf32, #tpu.memory_space<vmem>>, vector<1x512xf32>
    tpu.vector_store %arg3[%c0_39, %c0_40], %91 {strides = array<i32>} : memref<1x512xf32, #tpu.memory_space<vmem>>, vector<1x512xf32>,
    return
  }
  func.func @transform_0(%arg0: i32) -> (i32, i32, i32) {
    %c0_i32 = arith.constant 0 : i32
    %c0_i32_0 = arith.constant 0 : i32
    %c0_i32_1 = arith.constant 0 : i32
    return %c0_i32, %arg0, %c0_i32_0 : i32, i32, i32
  }
  func.func @transform_1(%arg0: i32) -> (i32, i32) {
    %c0_i32 = arith.constant 0 : i32
    %c0_i32_0 = arith.constant 0 : i32
    return %arg0, %c0_i32 : i32, i32
  }
  func.func @transform_2(%arg0: i32) -> (i32, i32) {
    %c0_i32 = arith.constant 0 : i32
    %c0_i32_0 = arith.constant 0 : i32
    return %arg0, %c0_i32 : i32, i32
  }
}

</mosaic_0001>

<llo_original>
// kernel: tpu_custom_call.1
$region0: #{tpu_custom_call.1}
  #allocation0 [shape = 'u32[]', space=smem, size = 0x4, offset = 0x4, fixed_abs, tag = 'smem constant byte address 0x4 - core index']
  #allocation1 [shape = 'u32[144,128]{1,0:T(1,128)}', space=vmem, size = 0x12000, scoped, tag = 'internal scratch']
  %s0 = inlined_call_operand.hbm [shape: f32[5,1,512], index: 0, kind: input, shape index: {}]
  %s1 = inlined_call_operand.hbm [shape: s32[1,512], index: 1, kind: input, shape index: {}]
  %s2 = inlined_call_operand.hbm [shape: f32[1,512], index: 2, kind: output, shape index: {}]
  %s3 = sld [smem:[#allocation0]]
  $region26: #{tpu_custom_call.1} parent=0
    _
  %s5 = ssub.s32 1, %s3
  %s6 = scalar_select 0, %s5, %s3
  $region1: #{tpu_custom_call.1} parent=0
    #allocation2 [shape = 'u8[10240]{0}', space=vmem, size = 0x2800, scoped, tag = 'input window, operand 0, single buffered']
    #allocation3 [shape = 's32[1]{0}', space=sflag, size = 0x4, scoped, tag = 'scoped memory for tpu_custom_call.1']
    #allocation4 [shape = 's32[1]{0}', space=sflag, size = 0x4, scoped, tag = 'scoped memory for tpu_custom_call.1']
    #allocation5 [shape = 'u8[2048]{0}', space=vmem, size = 0x800, scoped, tag = 'input window, operand 1, single buffered']
    #allocation6 [shape = 's32[1]{0}', space=sflag, size = 0x4, scoped, tag = 'scoped memory for tpu_custom_call.1']
    #allocation7 [shape = 'u8[2048]{0}', space=vmem, size = 0x800, scoped, tag = 'output window, operand 0, single buffered']
    %7 = vsyncpa [#allocation3], 0
    %8 = vsyncpa [#allocation6], 0
    %9 = vsyncpa [#allocation4], 0
    // Predicated region
    $region2: #{tpu_custom_call.1} parent=1 // pred_check
      _
    $region3: #{tpu_custom_call.1} parent=1 // pred_check_branch
      %11 = sbr.rel (0) target = $region5
    $region4: #{tpu_custom_call.1} parent=1 // pred_region
      %s13 = ssub.s32 320, 320
      %14 = vsyncadd [#allocation3], %s13
      %s15 = sshll.u32 [#allocation2], 4
      %s16 = int_to_ptr.vmem [resolvable:$true] %s15
      %21 = dma.hbm_to_vmem [thread:$0]  %s0, 320, %s16, [#allocation3], 64, 64, 4
    $region5: #{tpu_custom_call.1} parent=1 // pred_fallthru
      _
    // Predicated region
    $region6: #{tpu_custom_call.1} parent=1 // pred_check
      _
    $region7: #{tpu_custom_call.1} parent=1 // pred_check_branch
      %23 = sbr.rel (0) target = $region9
    $region8: #{tpu_custom_call.1} parent=1 // pred_region
      %s25 = ssub.s32 64, 64
      %26 = vsyncadd [#allocation6], %s25
      %s28 = sshll.u32 [#allocation5], 4
      %s29 = int_to_ptr.vmem [resolvable:$true] %s28
      %31 = dma.hbm_to_vmem [thread:$0]  %s1, 64, %s29, [#allocation6]
    $region9: #{tpu_custom_call.1} parent=1 // pred_fallthru
      _
    // Predicated region
    $region10: #{tpu_custom_call.1} parent=1 // pred_check
      _
    $region11: #{tpu_custom_call.1} parent=1 // pred_check_branch
      %33 = sbr.rel (0) target = $region13
    $region12: #{tpu_custom_call.1} parent=1 // pred_region
      %34 = dma.done [#allocation3], 320
    $region13: #{tpu_custom_call.1} parent=1 // pred_fallthru
      _
    // Predicated region
    $region14: #{tpu_custom_call.1} parent=1 // pred_check
      _
    $region15: #{tpu_custom_call.1} parent=1 // pred_check_branch
      %36 = sbr.rel (0) target = $region17
    $region16: #{tpu_custom_call.1} parent=1 // pred_region
      %37 = dma.done [#allocation6], 64
    $region17: #{tpu_custom_call.1} parent=1 // pred_fallthru
      _
    %v38 = vld [vmem:[#allocation5] sm:$0xf]
    %v39 = vld [vmem:[#allocation2] sm:$0xf]
    %s40 = scalar_lea.vmem [#allocation2], 4
    %v41 = vld [vmem:[%s40] sm:$0xf]
    %v42 = vmax.f32 %v39, %v41
    %s43 = scalar_lea.vmem [#allocation2], 8
    %v44 = vld [vmem:[%s43] sm:$0xf]
    %v45 = vmax.f32 %v42, %v44
    %s46 = scalar_lea.vmem [#allocation2], 12
    %v47 = vld [vmem:[%s46] sm:$0xf]
    %v48 = vmax.f32 %v45, %v47
    %s49 = scalar_lea.vmem [#allocation2], 16
    %v50 = vld [vmem:[%s49] sm:$0xf]
    %v51 = vmax.f32 %v48, %v50
    %v52 = vsub.f32 %v39, %v51
    %v53 = vmul.f32 %v52, 1.442695
    %v54 = vpow.pop %v53
    %v55 = vadd.f32 %v54, 0.0
    %vm56 = vcmp.eq.s32.totalorder %v38, 0
    %v57 = vsel %vm56, %v39, 0.0
    %vm58 = vcmp.eq.f32.partialorder %v39, %v51
    %v59 = vsel %vm58, 0, 5
    %v60 = vsel %vm58, %v59, 5
    %v61 = vsub.f32 %v41, %v51
    %v62 = vmul.f32 %v61, 1.442695
    %v63 = vpow.pop %v62
    %v64 = vadd.f32 %v55, %v63
    %vm65 = vcmp.eq.s32.totalorder %v38, 1
    %v66 = vsel %vm65, %v41, %v57
    %vm67 = vcmp.eq.f32.partialorder %v41, %v51
    %v68 = vsel %vm67, 1, 5
    %vm69 = vcmp.lt.s32.totalorder %v60, %v68
    %v70 = vsel %vm69, %v60, %v68
    %v71 = vsub.f32 %v44, %v51
    %v72 = vmul.f32 %v71, 1.442695
    %v73 = vpow.pop %v72
    %v74 = vadd.f32 %v64, %v73
    %vm75 = vcmp.eq.s32.totalorder %v38, 2
    %v76 = vsel %vm75, %v44, %v66
    %vm77 = vcmp.eq.f32.partialorder %v44, %v51
    %v78 = vsel %vm77, 2, 5
    %vm79 = vcmp.lt.s32.totalorder %v70, %v78
    %v80 = vsel %vm79, %v70, %v78
    %v81 = vsub.f32 %v47, %v51
    %v82 = vmul.f32 %v81, 1.442695
    %v83 = vpow.pop %v82
    %v84 = vadd.f32 %v74, %v83
    %vm85 = vcmp.eq.s32.totalorder %v38, 3
    %v86 = vsel %vm85, %v47, %v76
    %vm87 = vcmp.eq.f32.partialorder %v47, %v51
    %v88 = vsel %vm87, 3, 5
    %vm89 = vcmp.lt.s32.totalorder %v80, %v88
    %v90 = vsel %vm89, %v80, %v88
    %v91 = vsub.f32 %v50, %v51
    %v92 = vmul.f32 %v91, 1.442695
    %v93 = vpow.pop %v92
    %v94 = vadd.f32 %v84, %v93
    %vm95 = vcmp.eq.s32.totalorder %v38, 4
    %v96 = vsel %vm95, %v50, %v86
    %vm97 = vcmp.eq.f32.partialorder %v50, %v51
    %v98 = vsel %vm97, 4, 5
    %vm99 = vcmp.lt.s32.totalorder %v90, %v98
    %v100 = vsel %vm99, %v90, %v98
    %v101 = vlog2.pop %v94
    %v102 = vmul.f32 %v101, 0.6931472
    %v103 = vadd.f32 %v51, %v102
    %v104 = vsub.f32 %v103, %v96
    %v105 = vsub.s32 %v100, %v38
    %vm106 = vcmp.lt.s32.totalorder %v105, 0
    %v107 = vsub.s32 0, %v105
    %v108 = vsel %vm106, %v107, %v105
    %v109 = vcvt.s32.f32 %v108
    %v110 = vadd.f32 %v109, 1.0
    %v111 = vmul.f32 %v110, %v104
    %v112 = vlaneseq
    %vm113 = vcmp.ge.s32.totalorder %v112, 0
    %vm114 = vcmp.lt.s32.totalorder %v112, 512
    %vm115 = vmand %vm113, %vm114
    %116 = vst.msk [vmem:[#allocation7] sm:$0xf] %vm115, %v111
    // Predicated region
    $region18: #{tpu_custom_call.1} parent=1 // pred_check
      _
    $region19: #{tpu_custom_call.1} parent=1 // pred_check_branch
      %118 = sbr.rel (0) target = $region21
    $region20: #{tpu_custom_call.1} parent=1 // pred_region
      %s120 = ssub.s32 64, 64
      %121 = vsyncadd [#allocation4], %s120
      %s123 = sshll.u32 [#allocation7], 4
      %s124 = int_to_ptr.vmem [resolvable:$true] %s123
      %126 = dma.vmem_to_hbm [thread:$0]  %s124, 64, %s2, [#allocation4]
    $region21: #{tpu_custom_call.1} parent=1 // pred_fallthru
      _
    // Predicated region
    $region22: #{tpu_custom_call.1} parent=1 // pred_check
      _
    $region23: #{tpu_custom_call.1} parent=1 // pred_check_branch
      %128 = sbr.rel (0) target = $region25
    $region24: #{tpu_custom_call.1} parent=1 // pred_region
      %129 = dma.done [#allocation4], 64
    $region25: #{tpu_custom_call.1} parent=1 // pred_fallthru
      _
    %130 = vsyncpa [#allocation3], 1
    %131 = vsyncpa [#allocation6], 1
    %132 = vsyncpa [#allocation4], 1

</llo_original>
